<compile_context>
chip_gen: v6e
topology: v6e:2x2x1
jax: 0.10.0
libtpu: 0.0.40
codegen_flags: <defaults>
</compile_context>

<pallas_src>
import jax
import jax.numpy as jnp
from jax.experimental import pallas as pl
from jax.experimental.pallas import tpu as pltpu

NB_CLASSES = 8
# Deterministic "parameters" from the module's __init__.
CLASS_WEIGHTS_LIST = (0.00020532, 0.015655, 0.067465, 0.1717,
                      0.49341, 0.018606, 0.052471, 0.18049)


def _make_wce_kernel(c, hw, tm, need_mask):
    """Builds the per-tile kernel. c / hw / tm are static Python ints."""

    def kernel(w_ref, x_ref, t_ref, loss_ref, wsum_ref):
        x = x_ref[0].astype(jnp.float32)       # (C, tm): classes on sublanes, pixels on lanes
        t = t_ref[0]                           # (1, tm) int32 targets
        w_col = w_ref[...]                     # (C, 1) f32 class weights (resident block)

        # One-hot "hit" mask: hit[k, p] == True iff target[p] == k.
        classes = jax.lax.broadcasted_iota(jnp.int32, (c, tm), 0)
        hit = classes == t                     # (C, tm) bool

        if need_mask:
            # Ragged tail of the pixel axis: the DMA'd block may hold garbage
            # past `hw`. Drop those lanes from the one-hot and zero the tail
            # logits so no NaN/Inf can reach the tile sums (0 * NaN would).
            j = pl.program_id(1)
            col = j * tm + jax.lax.broadcasted_iota(jnp.int32, (1, tm), 1)
            valid = col < hw                   # (1, tm)
            hit = jnp.logical_and(hit, valid)
            x = jnp.where(valid, x, 0.0)

        # Numerically-stable log-sum-exp over the class (sublane) axis.
        m = jnp.max(x, axis=0, keepdims=True)                              # (1, tm)
        lse = m + jnp.log(jnp.sum(jnp.exp(x - m), axis=0, keepdims=True))  # (1, tm)

        # Weighted one-hot at full (C, tm) density:
        #   w_oh[k, p] = weight[k] if (target[p] == k and p valid) else 0.
        w_oh = jnp.where(hit, w_col, 0.0)                                  # (C, tm)

        # Per-pixel weighted NLL folded into one full-density product:
        #   sum_k w_oh[k, p] * (lse[p] - x[k, p]) = weight[t_p] * nll_p.
        contrib = w_oh * (lse - x)                                         # (C, tm)

        loss_p = jnp.sum(contrib)   # sum(weight[target] * nll) over this tile
        wsum_p = jnp.sum(w_oh)      # sum(weight[target])       over this tile

        loss_ref[...] = jnp.broadcast_to(loss_p, (1, 1, 1, 128))
        wsum_ref[...] = jnp.broadcast_to(wsum_p, (1, 1, 1, 128))

    return kernel


def _choose_tile(hw, n, tile_m):
    """Pixel-tile size: big (amortize per-step overhead) but keep enough
    parallel grid steps that a 2-TC chip (v7x) can use both cores."""
    tm = hw if hw <= tile_m else max((tile_m // 128) * 128, 128)
    if n * pl.cdiv(hw, tm) < 4 and hw >= 4 * 512:
        tiles_per_n = pl.cdiv(4, n)
        cand = max(pl.cdiv(pl.cdiv(hw, tiles_per_n), 128) * 128, 128)
        tm = min(tm, cand)
    return min(tm, hw)


def weighted_cross_entropy_loss(inputs, target, *, tile_m=32768):
    """JAX/Pallas equivalent of MySoftmaxCrossEntropyWeightedLoss.forward.

    `inputs` is NCHW logits in any float dtype (bf16 recommended — it halves
    HBM traffic; math is f32 in-kernel). `target` holds integer class indices
    with matching spatial shape.
    """
    if inputs.ndim > 2:
        n, c = inputs.shape[0], inputs.shape[1]
        x3 = inputs.reshape(n, c, -1)          # (N, C, HW): pure reshape, no copy
    else:
        # Rare 2-D (M, C) path: classes onto the leading axis (this one IS a copy).
        c = inputs.shape[1]
        n = 1
        x3 = inputs.T[None]                    # (1, C, M)
    assert c == NB_CLASSES
    hw = x3.shape[2]

    t3 = target.reshape(n, 1, hw)
    if t3.dtype != jnp.int32:
        t3 = t3.astype(jnp.int32)              # no-op when targets already int32

    tm = _choose_tile(hw, n, tile_m)
    n_tiles = pl.cdiv(hw, tm)
    need_mask = (hw % tm) != 0

    w_arr = jnp.asarray(CLASS_WEIGHTS_LIST[:c], jnp.float32).reshape(c, 1)

    kernel = _make_wce_kernel(c, hw, tm, need_mask)

    loss_parts, wsum_parts = pl.pallas_call(
        kernel,
        out_shape=(jax.ShapeDtypeStruct((n, n_tiles, 1, 128), jnp.float32),
                   jax.ShapeDtypeStruct((n, n_tiles, 1, 128), jnp.float32)),
        grid=(n, n_tiles),
        in_specs=[
            pl.BlockSpec((c, 1), lambda i, j: (0, 0)),         # class weights (tiny, resident)
            pl.BlockSpec((1, c, tm), lambda i, j: (i, 0, j)),  # logits tile
            pl.BlockSpec((1, 1, tm), lambda i, j: (i, 0, j)),  # target tile
        ],
        out_specs=[
            pl.BlockSpec((1, 1, 1, 128), lambda i, j: (i, j, 0, 0)),
            pl.BlockSpec((1, 1, 1, 128), lambda i, j: (i, j, 0, 0)),
        ],
        compiler_params=pltpu.CompilerParams(
            dimension_semantics=("parallel", "parallel"),
            vmem_limit_bytes=32 * 1024 * 1024,
        ),
    )(w_arr, x3, t3)

    loss_sum = jnp.sum(loss_parts[:, :, 0, 0])
    w_sum = jnp.sum(wsum_parts[:, :, 0, 0])
    return loss_sum / w_sum


def _reference_loss(inputs, target):
    """Pure-JAX reference mirroring nn.CrossEntropyLoss(weight, 'mean')."""
    n, c = inputs.shape[0], inputs.shape[1]
    x = inputs.reshape(n, c, -1).transpose(0, 2, 1).reshape(-1, c)
    t = target.reshape(-1).astype(jnp.int32)
    logp = jax.nn.log_softmax(x.astype(jnp.float32), axis=-1)
    nll = -jnp.take_along_axis(logp, t[:, None], axis=-1)[:, 0]
    w_t = jnp.asarray(CLASS_WEIGHTS_LIST, jnp.float32)[t]
    return jnp.sum(w_t * nll) / jnp.sum(w_t)


if __name__ == "__main__":
    key = jax.random.PRNGKey(0)
    k1, k2, k3, k4 = jax.random.split(key, 4)

    # Case 1: standard NCHW f32 input, spatial size a multiple of the lane width.
    N, C, H, W = 2, NB_CLASSES, 16, 16
    logits = jax.random.normal(k1, (N, C, H, W), dtype=jnp.float32)
    target = jax.random.randint(k2, (N, H, W), 0, C, dtype=jnp.int32)
    loss = jax.block_until_ready(weighted_cross_entropy_loss(logits, target))
    ref = jax.block_until_ready(_reference_loss(logits, target))
    assert jnp.allclose(loss, ref, rtol=1e-5, atol=1e-5), (loss, ref)

    # Case 2: bf16 logits path (halves the dominant HBM stream; f32 math in-kernel).
    loss_bf = jax.block_until_ready(
        weighted_cross_entropy_loss(logits.astype(jnp.bfloat16), target))
    ref_bf = jax.block_until_ready(
        _reference_loss(logits.astype(jnp.bfloat16).astype(jnp.float32), target))
    assert jnp.allclose(loss_bf, ref_bf, rtol=1e-4, atol=1e-4), (loss_bf, ref_bf)

    # Case 3: ragged spatial extent with a small tile to exercise the masked
    # tail path (no jnp.pad of the logits anywhere).
    H2, W2 = 15, 20   # HW = 300, not a multiple of 128
    logits2 = jax.random.normal(k3, (N, C, H2, W2), dtype=jnp.float32)
    target2 = jax.random.randint(k4, (N, H2, W2), 0, C, dtype=jnp.int32)
    loss2 = jax.block_until_ready(
        weighted_cross_entropy_loss(logits2, target2, tile_m=128))
    ref2 = jax.block_until_ready(_reference_loss(logits2, target2))
    assert jnp.allclose(loss2, ref2, rtol=1e-5, atol=1e-5), (loss2, ref2)

    print("KERNEL_OK")
</pallas_src>

<mosaic_0001>
module attributes {stable_mosaic.version = 11 : i64} {
  func.func @kernel(%arg0: i32, %arg1: i32, %arg2: memref<8x1xf32, #tpu.memory_space<vmem>>, %arg3: memref<1x8x256xf32, #tpu.memory_space<vmem>>, %arg4: memref<1x1x256xi32, #tpu.memory_space<vmem>>, %arg5: memref<1x1x1x128xf32, #tpu.memory_space<vmem>>, %arg6: memref<1x1x1x128xf32, #tpu.memory_space<vmem>>) attributes {dimension_semantics = [#tpu.dimension_semantics<parallel>, #tpu.dimension_semantics<parallel>], iteration_bounds = array<i64: 2, 1>, scalar_prefetch = 0 : i64, scratch_operands = 0 : i64, tpu.core_type = #tpu.core_type<tc>, window_params = [{pipeline_mode = #tpu.pipeline_mode<synchronous>, transform_indices = @transform_0, window_bounds = array<i64: 8, 1>}, {transform_indices = @transform_1, window_bounds = array<i64: 1, 8, 256>}, {transform_indices = @transform_2, window_bounds = array<i64: 1, 1, 256>}, {transform_indices = @transform_3, window_bounds = array<i64: 1, 1, 1, 128>}, {transform_indices = @transform_4, window_bounds = array<i64: 1, 1, 1, 128>}]} {
    %c0 = arith.constant 0 : index
    %c0_0 = arith.constant 0 : index
    %c0_1 = arith.constant 0 : index
    %0 = vector.load %arg3[%c0, %c0_0, %c0_1] : memref<1x8x256xf32, #tpu.memory_space<vmem>>, vector<1x8x256xf32>
    %1 = vector.shape_cast %0 : vector<1x8x256xf32> to vector<8x256xf32>
    %c0_2 = arith.constant 0 : index
    %c0_3 = arith.constant 0 : index
    %c0_4 = arith.constant 0 : index
    %2 = vector.load %arg4[%c0_2, %c0_3, %c0_4] : memref<1x1x256xi32, #tpu.memory_space<vmem>>, vector<1x1x256xi32>
    %3 = vector.shape_cast %2 : vector<1x1x256xi32> to vector<1x256xi32>
    %c0_5 = arith.constant 0 : index
    %c0_6 = arith.constant 0 : index
    %4 = vector.load %arg2[%c0_5, %c0_6] : memref<8x1xf32, #tpu.memory_space<vmem>>, vector<8x1xf32>
    %5 = tpu.iota {dimensions = array<i32: 0>} : vector<8x256xi32>
    %6 = vector.broadcast %3 : vector<1x256xi32> to vector<8x256xi32>
    %7 = arith.cmpi eq, %5, %6 : vector<8x256xi32>
    %cst = arith.constant dense<0xFF800000> : vector<256xf32>
    %8 = vector.multi_reduction <maximumf>, %1, %cst [0] : vector<8x256xf32> to vector<256xf32>
    %9 = vector.shape_cast %8 : vector<256xf32> to vector<1x256xf32>
    %10 = vector.broadcast %9 : vector<1x256xf32> to vector<8x256xf32>
    %11 = arith.subf %1, %10 : vector<8x256xf32>
    %12 = math.exp %11 : vector<8x256xf32>
    %cst_7 = arith.constant dense<0.000000e+00> : vector<256xf32>
    %13 = vector.multi_reduction <add>, %12, %cst_7 [0] : vector<8x256xf32> to vector<256xf32>
    %14 = vector.shape_cast %13 : vector<256xf32> to vector<1x256xf32>
    %15 = math.log %14 : vector<1x256xf32>
    %16 = arith.addf %9, %15 : vector<1x256xf32>
    %cst_8 = arith.constant 0.000000e+00 : f32
    %17 = vector.shape_cast %4 : vector<8x1xf32> to vector<8x1xf32>
    %18 = vector.broadcast %17 : vector<8x1xf32> to vector<8x256xf32>
    %19 = vector.broadcast %cst_8 : f32 to vector<8x256xf32>
    %20 = arith.select %7, %18, %19 : vector<8x256xi1>, vector<8x256xf32>
    %21 = vector.broadcast %16 : vector<1x256xf32> to vector<8x256xf32>
    %22 = arith.subf %21, %1 : vector<8x256xf32>
    %23 = arith.mulf %20, %22 : vector<8x256xf32>
    %24 = vector.shape_cast %23 : vector<8x256xf32> to vector<1x8x256xf32>
    %cst_9 = arith.constant dense<0.000000e+00> : vector<1xf32>
    %25 = vector.multi_reduction <add>, %24, %cst_9 [1, 2] : vector<1x8x256xf32> to vector<1xf32>
    %26 = vector.shape_cast %25 : vector<1xf32> to vector<1x1x1xf32>
    %27 = vector.extract %26[0, 0, 0] : f32 from vector<1x1x1xf32>
    %28 = vector.shape_cast %20 : vector<8x256xf32> to vector<1x8x256xf32>
    %cst_10 = arith.constant dense<0.000000e+00> : vector<1xf32>
    %29 = vector.multi_reduction <add>, %28, %cst_10 [1, 2] : vector<1x8x256xf32> to vector<1xf32>
    %30 = vector.shape_cast %29 : vector<1xf32> to vector<1x1x1xf32>
    %31 = vector.extract %30[0, 0, 0] : f32 from vector<1x1x1xf32>
    %32 = vector.broadcast %27 : f32 to vector<1x1x1x128xf32>
    %c0_11 = arith.constant 0 : index
    %c0_12 = arith.constant 0 : index
    %c0_13 = arith.constant 0 : index
    %c0_14 = arith.constant 0 : index
    %33 = vector.load %arg5[%c0_11, %c0_12, %c0_13, %c0_14] : memref<1x1x1x128xf32, #tpu.memory_space<vmem>>, vector<1x1x1x128xf32>
    tpu.vector_store %arg5[%c0_11, %c0_12, %c0_13, %c0_14], %32 {strides = array<i32>} : memref<1x1x1x128xf32, #tpu.memory_space<vmem>>, vector<1x1x1x128xf32>,
    %34 = vector.broadcast %31 : f32 to vector<1x1x1x128xf32>
    %c0_15 = arith.constant 0 : index
    %c0_16 = arith.constant 0 : index
    %c0_17 = arith.constant 0 : index
    %c0_18 = arith.constant 0 : index
    %35 = vector.load %arg6[%c0_15, %c0_16, %c0_17, %c0_18] : memref<1x1x1x128xf32, #tpu.memory_space<vmem>>, vector<1x1x1x128xf32>
    tpu.vector_store %arg6[%c0_15, %c0_16, %c0_17, %c0_18], %34 {strides = array<i32>} : memref<1x1x1x128xf32, #tpu.memory_space<vmem>>, vector<1x1x1x128xf32>,
    return
  }
  func.func @transform_0(%arg0: i32, %arg1: i32) -> (i32, i32) {
    %c0_i32 = arith.constant 0 : i32
    %c0_i32_0 = arith.constant 0 : i32
    %c0_i32_1 = arith.constant 0 : i32
    return %c0_i32, %c0_i32_0 : i32, i32
  }
  func.func @transform_1(%arg0: i32, %arg1: i32) -> (i32, i32, i32) {
    %c0_i32 = arith.constant 0 : i32
    %c0_i32_0 = arith.constant 0 : i32
    return %arg0, %c0_i32, %arg1 : i32, i32, i32
  }
  func.func @transform_2(%arg0: i32, %arg1: i32) -> (i32, i32, i32) {
    %c0_i32 = arith.constant 0 : i32
    %c0_i32_0 = arith.constant 0 : i32
    return %arg0, %c0_i32, %arg1 : i32, i32, i32
  }
  func.func @transform_3(%arg0: i32, %arg1: i32) -> (i32, i32, i32, i32) {
    %c0_i32 = arith.constant 0 : i32
    %c0_i32_0 = arith.constant 0 : i32
    %c0_i32_1 = arith.constant 0 : i32
    return %arg0, %arg1, %c0_i32, %c0_i32_0 : i32, i32, i32, i32
  }
  func.func @transform_4(%arg0: i32, %arg1: i32) -> (i32, i32, i32, i32) {
    %c0_i32 = arith.constant 0 : i32
    %c0_i32_0 = arith.constant 0 : i32
    %c0_i32_1 = arith.constant 0 : i32
    return %arg0, %arg1, %c0_i32, %c0_i32_0 : i32, i32, i32, i32
  }
}

</mosaic_0001>

<llo_original>
// kernel: tpu_custom_call.1
$region0: #{tpu_custom_call.1}
  #allocation0 [shape = 'u32[]', space=smem, size = 0x4, offset = 0x4, fixed_abs, tag = 'smem constant byte address 0x4 - core index']
  #allocation1 [shape = 'u32[144,128]{1,0:T(1,128)}', space=vmem, size = 0x12000, scoped, tag = 'internal scratch']
  %s0 = inlined_call_operand.vmem [shape: f32[8,1], index: 0, kind: input, shape index: {}]
  %s1 = inlined_call_operand.hbm [shape: f32[2,8,256], index: 1, kind: input, shape index: {}]
  %s2 = inlined_call_operand.vmem [shape: s32[2,1,256], index: 2, kind: input, shape index: {}]
  %s3 = inlined_call_operand.hbm [shape: f32[2,1,1,128], index: 3, kind: output, shape index: {0}]
  %s4 = inlined_call_operand.hbm [shape: f32[2,1,1,128], index: 4, kind: output, shape index: {1}]
  %5 = xla_tuple %s3, %s4
  %s6 = sld [smem:[#allocation0]]
  $region57: #{tpu_custom_call.1} parent=0
    _
  %s8 = ssub.s32 1, %s6
  %s9 = scalar_select 0, %s8, %s6
  $region1: #{tpu_custom_call.1} parent=0
    #allocation2 [shape = 'u8[16384]{0}', space=vmem, size = 0x4000, scoped, tag = 'input window, operand 1']
    #allocation3 [shape = 's32[2]{0}', space=sflag, size = 0x8, scoped, tag = 'scoped memory for tpu_custom_call.1']
    #allocation4 [shape = 's32[2]{0}', space=sflag, size = 0x8, scoped, tag = 'scoped memory for tpu_custom_call.1']
    #allocation5 [shape = 'u8[1024]{0}', space=vmem, size = 0x400, scoped, tag = 'output window, operand 0']
    #allocation6 [shape = 'u8[1024]{0}', space=vmem, size = 0x400, scoped, tag = 'output window, operand 1']
    #allocation7 [shape = 's32[2]{0}', space=sflag, size = 0x8, scoped, tag = 'scoped memory for tpu_custom_call.1']
    %10 = vsyncpa [#allocation3], 0
    %s11 = scalar_lea.sflag [#allocation3], 1
    %12 = vsyncpa %s11, 0
    %13 = vsyncpa [#allocation4], 0
    %s14 = scalar_lea.sflag [#allocation4], 1
    %15 = vsyncpa %s14, 0
    %16 = vsyncpa [#allocation7], 0
    %s17 = scalar_lea.sflag [#allocation7], 1
    %18 = vsyncpa %s17, 0
    loop: start=0, step=1, limit=4
    $region2: #{tpu_custom_call.1} parent=1 // loop_pre_header
      _
    $region3: #{tpu_custom_call.1} parent=1 // loop_header
      %s20 = sphi 0, %s24
      %p21 = scmp.ge.s32.totalorder %s20, 4
      %s27 = sphi 0, %s39
      %s28 = sphi 0, %s35
      %s29 = sphi 0, %s27
      %s30 = sphi 0, %s28
      %s31 = sphi 0, %s29
      %s32 = sphi 0, %s30
      %s40 = sphi 0, %s40
      %s42 = sphi 0, %s40
      %s43 = sphi 0, %s42
      %s57 = sphi 0, %s43
      %s65 = sphi 0, %s67
      %s68 = sphi 0, %s65
      %s69 = sphi 0, %s68
      %s85 = sphi 0, %s69
      %s93 = sphi 0, %s95
      %s96 = sphi 0, %s93
      %s97 = sphi 0, %s96
      %s113 = sphi 0, %s97
      %s121 = sphi 0, %s123
      %s124 = sphi 0, %s121
      %s125 = sphi 0, %s124
      %s141 = sphi 0, %s125
      %s149 = sphi 0, %s151
      %s152 = sphi 0, %s149
      %s153 = sphi 0, %s152
      %s169 = sphi 0, %s153
    $region4: #{tpu_custom_call.1} parent=1 // loop_header_branch
      %23 = sbr.rel (%p21) target = $region8
    $region5: #{tpu_custom_call.1} parent=1 // loop_body
      %s25 = ssub.s32 %s20, 1
      %s26 = ssub.s32 %s20, 2
      %s33 = sadd.s32 1, %s28
      %p34 = scmp.ge.s32.totalorder %s33, 1
      %s35 = scalar_select %p34, 0, %s33
      %s36 = sadd.s32 1, %s27
      %s37 = scalar_select %p34, %s36, %s27
      %p38 = scmp.ge.s32.totalorder %s37, 2
      %s39 = scalar_select %p38, 0, %s37
      %s41 = sadd.s32 %s40, 1
      %p44 = scmp.eq.s32.totalorder %s20, 1
      %p45 = scmp.ne.s32.totalorder %s40, %s42
      %p46 = scmp.eq.s32.totalorder %s20, 0
      %p47 = por %p45, %p46
      %p48 = scmp.ne.s32.totalorder %s40, %s42
      %p49 = scmp.eq.s32.totalorder %s25, 1
      %p50 = por %p48, %p49
      %p51 = scmp.ne.s32.totalorder %s42, %s43
      %p52 = scmp.eq.s32.totalorder %s25, 0
      %p53 = por %p51, %p52
      %p54 = scmp.ne.s32.totalorder %s42, %s43
      %p55 = scmp.eq.s32.totalorder %s26, 1
      %p56 = por %p54, %p55
      %p58 = scmp.ne.s32.totalorder %s43, %s57
      %p59 = scmp.eq.s32.totalorder %s26, 0
      %p60 = por %p58, %p59
      %s61 = ssub.s32 %s27, %s39
      %s62 = ssub.s32 %s28, %s35
      %s63 = sor.u32 %s61, %s62
      %p64 = scmp.eq.s32.totalorder %s63, 0
      %s66 = sadd.s32 %s65, 1
      %s67 = scalar_select %p64, %s65, %s66
      %p70 = pneg %p64
      %p71 = scmp.eq.s32.totalorder %s20, 1
      %p72 = por %p70, %p71
      %p73 = scmp.ne.s32.totalorder %s65, %s68
      %p74 = scmp.eq.s32.totalorder %s20, 0
      %p75 = por %p73, %p74
      %p76 = scmp.ne.s32.totalorder %s65, %s68
      %p77 = scmp.eq.s32.totalorder %s25, 1
      %p78 = por %p76, %p77
      %p79 = scmp.ne.s32.totalorder %s68, %s69
      %p80 = scmp.eq.s32.totalorder %s25, 0
      %p81 = por %p79, %p80
      %p82 = scmp.ne.s32.totalorder %s68, %s69
      %p83 = scmp.eq.s32.totalorder %s26, 1
      %p84 = por %p82, %p83
      %p86 = scmp.ne.s32.totalorder %s69, %s85
      %p87 = scmp.eq.s32.totalorder %s26, 0
      %p88 = por %p86, %p87
      %s89 = ssub.s32 %s27, %s39
      %s90 = ssub.s32 %s28, %s35
      %s91 = sor.u32 %s89, %s90
      %p92 = scmp.eq.s32.totalorder %s91, 0
      %s94 = sadd.s32 %s93, 1
      %s95 = scalar_select %p92, %s93, %s94
      %p98 = pneg %p92
      %p99 = scmp.eq.s32.totalorder %s20, 1
      %p100 = por %p98, %p99
      %p101 = scmp.ne.s32.totalorder %s93, %s96
      %p102 = scmp.eq.s32.totalorder %s20, 0
      %p103 = por %p101, %p102
      %p104 = scmp.ne.s32.totalorder %s93, %s96
      %p105 = scmp.eq.s32.totalorder %s25, 1
      %p106 = por %p104, %p105
      %p107 = scmp.ne.s32.totalorder %s96, %s97
      %p108 = scmp.eq.s32.totalorder %s25, 0
      %p109 = por %p107, %p108
      %p110 = scmp.ne.s32.totalorder %s96, %s97
      %p111 = scmp.eq.s32.totalorder %s26, 1
      %p112 = por %p110, %p111
      %p114 = scmp.ne.s32.totalorder %s97, %s113
      %p115 = scmp.eq.s32.totalorder %s26, 0
      %p116 = por %p114, %p115
      %s117 = ssub.s32 %s27, %s39
      %s118 = ssub.s32 %s28, %s35
      %s119 = sor.u32 %s117, %s118
      %p120 = scmp.eq.s32.totalorder %s119, 0
      %s122 = sadd.s32 %s121, 1
      %s123 = scalar_select %p120, %s121, %s122
      %p126 = pneg %p120
      %p127 = scmp.eq.s32.totalorder %s20, 1
      %p128 = por %p126, %p127
      %p129 = scmp.ne.s32.totalorder %s121, %s124
      %p130 = scmp.eq.s32.totalorder %s20, 0
      %p131 = por %p129, %p130
      %p132 = scmp.ne.s32.totalorder %s121, %s124
      %p133 = scmp.eq.s32.totalorder %s25, 1
      %p134 = por %p132, %p133
      %p135 = scmp.ne.s32.totalorder %s124, %s125
      %p136 = scmp.eq.s32.totalorder %s25, 0
      %p137 = por %p135, %p136
      %p138 = scmp.ne.s32.totalorder %s124, %s125
      %p139 = scmp.eq.s32.totalorder %s26, 1
      %p140 = por %p138, %p139
      %p142 = scmp.ne.s32.totalorder %s125, %s141
      %p143 = scmp.eq.s32.totalorder %s26, 0
      %p144 = por %p142, %p143
      %s145 = ssub.s32 %s27, %s39
      %s146 = ssub.s32 %s28, %s35
      %s147 = sor.u32 %s145, %s146
      %p148 = scmp.eq.s32.totalorder %s147, 0
      %s150 = sadd.s32 %s149, 1
      %s151 = scalar_select %p148, %s149, %s150
      %p154 = pneg %p148
      %p155 = scmp.eq.s32.totalorder %s20, 1
      %p156 = por %p154, %p155
      %p157 = scmp.ne.s32.totalorder %s149, %s152
      %p158 = scmp.eq.s32.totalorder %s20, 0
      %p159 = por %p157, %p158
      %p160 = scmp.ne.s32.totalorder %s149, %s152
      %p161 = scmp.eq.s32.totalorder %s25, 1
      %p162 = por %p160, %p161
      %p163 = scmp.ne.s32.totalorder %s152, %s153
      %p164 = scmp.eq.s32.totalorder %s25, 0
      %p165 = por %p163, %p164
      %p166 = scmp.ne.s32.totalorder %s152, %s153
      %p167 = scmp.eq.s32.totalorder %s26, 1
      %p168 = por %p166, %p167
      %p170 = scmp.ne.s32.totalorder %s153, %s169
      %p171 = scmp.eq.s32.totalorder %s26, 0
      %p172 = por %p170, %p171
      %p173 = scmp.le.s32.totalorder 1, %s20
      %p174 = scmp.lt.s32.totalorder %s20, 3
      %p175 = pnand %p173, %p174
      %p176 = pneg %p175
      // Predicated region
      $region9: #{tpu_custom_call.1} parent=5 // pred_check
        _
      $region10: #{tpu_custom_call.1} parent=5 // pred_check_branch
        %178 = sbr.rel (%p175) target = $region12
      $region11: #{tpu_custom_call.1} parent=5 // pred_region
        %s179 = ssub.s32 %s20, 1
        // Predicated region
        $region13: #{tpu_custom_call.1} parent=11 // pred_check
          %p180 = pneg %p53
        $region14: #{tpu_custom_call.1} parent=11 // pred_check_branch
          %182 = sbr.rel (%p180) target = $region16
        $region15: #{tpu_custom_call.1} parent=11 // pred_region
          _
        $region16: #{tpu_custom_call.1} parent=11 // pred_fallthru
          _
      $region12: #{tpu_custom_call.1} parent=5 // pred_fallthru
        _
      %p183 = scmp.lt.s32.totalorder %s20, 2
      // Predicated region
      $region17: #{tpu_custom_call.1} parent=5 // pred_check
        %p184 = pneg %p183
      $region18: #{tpu_custom_call.1} parent=5 // pred_check_branch
        %186 = sbr.rel (%p184) target = $region20
      $region19: #{tpu_custom_call.1} parent=5 // pred_region
        // Predicated region
        $region21: #{tpu_custom_call.1} parent=19 // pred_check
          %p187 = pneg %p75
        $region22: #{tpu_custom_call.1} parent=19 // pred_check_branch
          %189 = sbr.rel (%p187) target = $region24
        $region23: #{tpu_custom_call.1} parent=19 // pred_region
          %s190 = sand.u32 %s65, 1
          %s191 = scalar_lea.sflag [#allocation3], %s190
          %s192 = sand.u32 %s65, 1
          %s193 = smul.addr %s192, 16
          %s194 = scalar_lea.vmem [#allocation2], %s193
          %s195 = smul.u32 2, %s28
          %s197 = ssub.s32 256, 256
          %198 = vsyncadd %s191, %s197
          %s199 = smul.addr %s27, 2
          %s200 = sadd.s32 %s195, %s199
          %s201 = smul.addr %s200, 128
          %s202 = scalar_lea.hbm %s1, %s201
          %s204 = sshll.u32 %s194, 4
          %s205 = int_to_ptr.vmem [resolvable:$true] %s204
          %207 = dma.hbm_to_vmem [thread:$0]  %s202, 256, %s205, %s191
        $region24: #{tpu_custom_call.1} parent=19 // pred_fallthru
          _
        // Predicated region
        $region25: #{tpu_custom_call.1} parent=19 // pred_check
          %p208 = pneg %p103
        $region26: #{tpu_custom_call.1} parent=19 // pred_check_branch
          %210 = sbr.rel (%p208) target = $region28
        $region27: #{tpu_custom_call.1} parent=19 // pred_region
          %s211 = smul.u32 2, %s28
          %p212 = scmp.lt.s32.totalorder %s27, 1
          %s213 = scalar_select %p212, %s27, 1
          %p214 = scmp.lt.s32.totalorder %s211, 1
          %s215 = scalar_select %p214, %s211, 1
          %s216 = smul.addr %s213, 2
          %s217 = sadd.s32 %s215, %s216
          %s218 = scalar_lea.vmem %s2, %s217
          %s219 = smul.u32 2, %s28
        $region28: #{tpu_custom_call.1} parent=19 // pred_fallthru
          _
      $region20: #{tpu_custom_call.1} parent=5 // pred_fallthru
        _
      %p220 = scmp.le.s32.totalorder 1, %s20
      %p221 = scmp.lt.s32.totalorder %s20, 3
      %p222 = pnand %p220, %p221
      %p223 = pneg %p222
      // Predicated region
      $region29: #{tpu_custom_call.1} parent=5 // pred_check
        _
      $region30: #{tpu_custom_call.1} parent=5 // pred_check_branch
        %225 = sbr.rel (%p222) target = $region32
      $region31: #{tpu_custom_call.1} parent=5 // pred_region
        %s226 = ssub.s32 %s20, 1
        %s227 = sand.u32 %s68, 1
        %s228 = scalar_lea.sflag [#allocation3], %s227
        %s229 = sand.u32 %s68, 1
        %s230 = smul.addr %s229, 16
        %s231 = scalar_lea.vmem [#allocation2], %s230
        // Predicated region
        $region33: #{tpu_custom_call.1} parent=31 // pred_check
          %p232 = pneg %p81
        $region34: #{tpu_custom_call.1} parent=31 // pred_check_branch
          %234 = sbr.rel (%p232) target = $region36
        $region35: #{tpu_custom_call.1} parent=31 // pred_region
          %235 = dma.done %s228, 256
        $region36: #{tpu_custom_call.1} parent=31 // pred_fallthru
          _
        %p236 = pneg %p53
        %p237 = pneg %p50
        %s238 = sand.u32 %s68, 1
        %s239 = scalar_lea.sflag [#allocation3], %s238
        %s240 = sand.u32 %s68, 1
        %s241 = smul.addr %s240, 16
        %s242 = scalar_lea.vmem [#allocation2], %s241
        %p243 = pneg %p81
        %p244 = pneg %p78
        %s245 = smul.u32 2, %s30
        %p246 = scmp.lt.s32.totalorder %s29, 1
        %s247 = scalar_select %p246, %s29, 1
        %p248 = scmp.lt.s32.totalorder %s245, 1
        %s249 = scalar_select %p248, %s245, 1
        %s250 = smul.addr %s247, 2
        %s251 = sadd.s32 %s249, %s250
        %s252 = scalar_lea.vmem %s2, %s251
        %p253 = pneg %p109
        %p254 = pneg %p106
        %p255 = pneg %p137
        %p256 = pneg %p134
        %s257 = sand.u32 %s124, 1
        %s258 = scalar_lea.sflag [#allocation4], %s257
        %s259 = sand.u32 %s124, 1
        %s260 = scalar_lea.vmem [#allocation5], %s259
        %p261 = pneg %p165
        %p262 = pneg %p162
        %s263 = sand.u32 %s152, 1
        %s264 = scalar_lea.sflag [#allocation7], %s263
        %s265 = sand.u32 %s152, 1
        %s266 = scalar_lea.vmem [#allocation6], %s265
        %s267 = smul.u32 2, %s30
        %s268 = smul.u32 2, %s30
        %p269 = scmp.lt.s32.totalorder %s29, 1
        %s270 = scalar_select %p269, %s29, 1
        %p271 = scmp.lt.s32.totalorder %s268, 1
        %s272 = scalar_select %p271, %s268, 1
        %s273 = smul.addr %s270, 2
        %s274 = sadd.s32 %s272, %s273
        %s275 = scalar_lea.vmem %s2, %s274
        %s276 = smul.u32 2, %s30
        %v277 = vld [vmem:[%s231] sm:$0xff]
        %v278 = vld [vmem:[%s231 + $0x8] sm:$0xff]
        %v279 = vld [vmem:[%s275] sm:$0x3]
        %v280 = vld [vmem:[%s0] sm:$0xff]
        %v281 = vlaneseq
        %v282 = vshrl.u32 %v281, 7
        %v283 = vlaneseq
        %v284 = vshrl.u32 %v283, 7
        %v285 = vsub.s32 0, %v284
        %v286 = vrot.slane %v279, %v285
        %v287 = vlaneseq
        %v288 = vshrl.u32 %v287, 7
        %v289 = vsub.s32 1, %v288
        %v290 = vrot.slane %v279, %v289
        %vm291 = vcmp.eq.s32.totalorder %v282, %v286
        %vm292 = vcmp.eq.s32.totalorder %v282, %v290
        %v293 = vrot.slane %v277, 4
        %v294 = vmax.f32 %v277, %v293
        %v295 = vrot.slane %v294, 2
        %v296 = vmax.f32 %v294, %v295
        %v297 = vrot.slane %v296, 1
        %v298 = vmax.f32 %v296, %v297
        %v299 = vrot.slane %v278, 4
        %v300 = vmax.f32 %v278, %v299
        %v301 = vrot.slane %v300, 2
        %v302 = vmax.f32 %v300, %v301
        %v303 = vrot.slane %v302, 1
        %v304 = vmax.f32 %v302, %v303
        %v305 = vsub.f32 %v277, %v298
        %v306 = vsub.f32 %v278, %v304
        %v307 = vmul.f32 %v305, 1.442695
        %v308 = vpow.pop %v307
        %v309 = vmul.f32 %v306, 1.442695
        %v310 = vpow.pop %v309
        %v311 = vrot.slane %v308, 4
        %v312 = vadd.f32 %v308, %v311
        %v313 = vrot.slane %v312, 2
        %v314 = vadd.f32 %v312, %v313
        %v315 = vrot.slane %v314, 1
        %v316 = vadd.f32 %v314, %v315
        %v317 = vrot.slane %v310, 4
        %v318 = vadd.f32 %v310, %v317
        %v319 = vrot.slane %v318, 2
        %v320 = vadd.f32 %v318, %v319
        %v321 = vrot.slane %v320, 1
        %v322 = vadd.f32 %v320, %v321
        %v323 = vlog2.pop %v316
        %v324 = vmul.f32 %v323, 0.6931472
        %v325 = vlog2.pop %v322
        %v326 = vmul.f32 %v325, 0.6931472
        %v327 = vadd.f32 %v298, %v324
        %v328 = vadd.f32 %v304, %v326
        %330 = vset.pattern.permute.xlu0 0
        %331 = vperm.xlu0 %330, %v280
        %v332 = vpop.permute.xlu0 %331
        %v334 = vsel %vm291, %v332, 0.0
        %v335 = vsel %vm292, %v332, 0.0
        %v336 = vsub.f32 %v327, %v277
        %v337 = vsub.f32 %v328, %v278
        %v338 = vmul.f32 %v334, %v336
        %v339 = vmul.f32 %v335, %v337
        %v340 = vadd.f32 %v338, %v339
        %341 = vadd.xlane.f32.xlu0 %v340
        %v342 = vpop.xlane.xlu0 %341
        %v343 = vrot.slane %v342, 4
        %v344 = vadd.f32 %v342, %v343
        %v345 = vrot.slane %v344, 2
        %v346 = vadd.f32 %v344, %v345
        %v347 = vrot.slane %v346, 1
        %v348 = vadd.f32 %v346, %v347
        %s349 = vtos %v348
        %v350 = vadd.f32 %v334, %v335
        %351 = vadd.xlane.f32.xlu0 %v350
        %v352 = vpop.xlane.xlu0 %351
        %v353 = vrot.slane %v352, 4
        %v354 = vadd.f32 %v352, %v353
        %v355 = vrot.slane %v354, 2
        %v356 = vadd.f32 %v354, %v355
        %v357 = vrot.slane %v356, 1
        %v358 = vadd.f32 %v356, %v357
        %s359 = vtos %v358
        %v360 = vstv %s349
        %361 = vst [vmem:[%s260] sm:$0x1] %v360
        %v362 = vstv %s359
        %363 = vst [vmem:[%s266] sm:$0x1] %v362
        %s364 = sand.u32 %s124, 1
        %s365 = scalar_lea.sflag [#allocation4], %s364
        %s366 = sand.u32 %s124, 1
        %s367 = scalar_lea.vmem [#allocation5], %s366
        %s368 = sand.u32 %s152, 1
        %s369 = scalar_lea.sflag [#allocation7], %s368
        %s370 = sand.u32 %s152, 1
        %s371 = scalar_lea.vmem [#allocation6], %s370
        // Predicated region
        $region37: #{tpu_custom_call.1} parent=31 // pred_check
          %p372 = pneg %p134
        $region38: #{tpu_custom_call.1} parent=31 // pred_check_branch
          %374 = sbr.rel (%p372) target = $region40
        $region39: #{tpu_custom_call.1} parent=31 // pred_region
          %s376 = ssub.s32 16, 16
          %377 = vsyncadd %s365, %s376
          %s378 = sadd.s32 %s30, %s29
          %s379 = smul.addr %s378, 16
          %s380 = scalar_lea.hbm %s3, %s379
          %s382 = sshll.u32 %s367, 4
          %s383 = int_to_ptr.vmem [resolvable:$true] %s382
          %385 = dma.vmem_to_hbm [thread:$0]  %s383, 16, %s380, %s365
        $region40: #{tpu_custom_call.1} parent=31 // pred_fallthru
          _
        // Predicated region
        $region41: #{tpu_custom_call.1} parent=31 // pred_check
          %p386 = pneg %p162
        $region42: #{tpu_custom_call.1} parent=31 // pred_check_branch
          %388 = sbr.rel (%p386) target = $region44
        $region43: #{tpu_custom_call.1} parent=31 // pred_region
          %s390 = ssub.s32 16, 16
          %391 = vsyncadd %s369, %s390
          %s392 = sadd.s32 %s30, %s29
          %s393 = smul.addr %s392, 16
          %s394 = scalar_lea.hbm %s4, %s393
          %s396 = sshll.u32 %s371, 4
          %s397 = int_to_ptr.vmem [resolvable:$true] %s396
          %399 = dma.vmem_to_hbm [thread:$0]  %s397, 16, %s394, %s369
        $region44: #{tpu_custom_call.1} parent=31 // pred_fallthru
          _
      $region32: #{tpu_custom_call.1} parent=5 // pred_fallthru
        _
      %p400 = scmp.le.s32.totalorder 2, %s20
      // Predicated region
      $region45: #{tpu_custom_call.1} parent=5 // pred_check
        %p401 = pneg %p400
      $region46: #{tpu_custom_call.1} parent=5 // pred_check_branch
        %403 = sbr.rel (%p401) target = $region48
      $region47: #{tpu_custom_call.1} parent=5 // pred_region
        %s404 = ssub.s32 %s20, 2
        // Predicated region
        $region49: #{tpu_custom_call.1} parent=47 // pred_check
          %p405 = pneg %p140
        $region50: #{tpu_custom_call.1} parent=47 // pred_check_branch
          %407 = sbr.rel (%p405) target = $region52
        $region51: #{tpu_custom_call.1} parent=47 // pred_region
          %s408 = sand.u32 %s125, 1
          %s409 = scalar_lea.sflag [#allocation4], %s408
          %s410 = sand.u32 %s125, 1
          %s411 = scalar_lea.vmem [#allocation5], %s410
          %412 = dma.done %s409, 16
        $region52: #{tpu_custom_call.1} parent=47 // pred_fallthru
          _
        // Predicated region
        $region53: #{tpu_custom_call.1} parent=47 // pred_check
          %p413 = pneg %p168
        $region54: #{tpu_custom_call.1} parent=47 // pred_check_branch
          %415 = sbr.rel (%p413) target = $region56
        $region55: #{tpu_custom_call.1} parent=47 // pred_region
          %s416 = sand.u32 %s153, 1
          %s417 = scalar_lea.sflag [#allocation7], %s416
          %s418 = sand.u32 %s153, 1
          %s419 = scalar_lea.vmem [#allocation6], %s418
          %420 = dma.done %s417, 16
        $region56: #{tpu_custom_call.1} parent=47 // pred_fallthru
          _
      $region48: #{tpu_custom_call.1} parent=5 // pred_fallthru
        _
    $region6: #{tpu_custom_call.1} parent=1 // loop_footer
      %s24 = sadd.s32 1, %s20
    $region7: #{tpu_custom_call.1} parent=1 // loop_footer_branch
      %19 = sbr.rel target = $region3
    $region8: #{tpu_custom_call.1} parent=1 // loop_exit
      _
    %421 = vsyncpa [#allocation3], 1
    %s422 = scalar_lea.sflag [#allocation3], 1
    %423 = vsyncpa %s422, 1
    %424 = vsyncpa [#allocation4], 1
    %s425 = scalar_lea.sflag [#allocation4], 1
    %426 = vsyncpa %s425, 1
    %427 = vsyncpa [#allocation7], 1
    %s428 = scalar_lea.sflag [#allocation7], 1
    %429 = vsyncpa %s428, 1

</llo_original>
